<compile_context>
chip_gen: v7x
topology: tpu7x:2x2x1
jax: 0.10.0
libtpu: 0.0.40
codegen_flags: <defaults>
</compile_context>

<pallas_src>
import jax
import jax.numpy as jnp
from jax.experimental import pallas as pl
from jax.experimental.pallas import tpu as pltpu


def _round_up(v, m):
    return (v + m - 1) // m * m


def _vmem_cap_bytes():
    # Generation-aware physical VMEM (v5e/v6e: 128 MiB, v7x: 64 MiB).
    try:
        return int(pltpu.get_tpu_info().vmem_capacity_bytes)
    except Exception:
        return 64 << 20  # conservative (v7x physical)


def _pad_hidden(H):
    """Lane-align the hidden dim. 128 everywhere; bump odd 128-multiples >256
    to a 256 multiple on v6e/v7x (2x256x256 MXU); keep 128 on v4/v5."""
    Hp = _round_up(H, 128)
    if Hp > 256 and Hp % 256 != 0:
        try:
            kind = jax.devices()[0].device_kind.lower()
        except Exception:
            kind = ""
        if ("v5" not in kind) and ("v4" not in kind):
            Hp = _round_up(Hp, 256)
    return Hp


def _const_block_spec(shape):
    """BlockSpec for a resident operand (constant index_map, never re-fetched).

    Returns (spec, buffer_count) so the VMEM budget can account for whether
    single-buffering (pipeline_mode=pl.Buffered(1)) was applied.
    """
    idx = lambda i: (0,) * len(shape)
    try:
        return pl.BlockSpec(shape, idx, pipeline_mode=pl.Buffered(1)), 1
    except TypeError:  # older jax without pipeline_mode kwarg: default 2-deep
        return pl.BlockSpec(shape, idx), 2


def _residual_linear_kernel(x_ref, w_ref, b_ref, o_ref):
    # Fused hot path: MXU matmul with f32 accumulation, then f32 bias +
    # residual add on the VPU, single cast to the output dtype.
    x = x_ref[...]
    y = jnp.dot(x, w_ref[...], preferred_element_type=jnp.float32)
    o_ref[...] = (y + b_ref[...] + x.astype(jnp.float32)).astype(o_ref.dtype)


def prepare_params(w_t, b, *, compute_dtype=jnp.bfloat16):
    """Pad + cast the Linear parameters once, outside the per-call hot path.

    w_t : [H, H]  PyTorch Linear weight transposed (weight.T, i.e. [in, out])
    b   : [H]
    Returns (w2 [Hp, Hp] compute_dtype, b2 [1, Hp] float32).
    """
    H = w_t.shape[0]
    Hp = _pad_hidden(H)
    w2 = w_t if Hp == H else jnp.pad(w_t, ((0, Hp - H), (0, Hp - H)))
    w2 = w2.astype(compute_dtype)
    b2 = (b if Hp == H else jnp.pad(b, (0, Hp - H)))
    b2 = b2.astype(jnp.float32).reshape(1, Hp)   # pre-cast: no per-step VPU cast
    return w2, b2


def residual_linear(x, w2, b2, *, tm_target=512, out_dtype=None):
    """out = x @ W^T + b + x, fused in a single tiled Pallas TPU kernel.

    x  : [B, S, H]
    w2 : [Hp, Hp] padded compute-dtype weight (from prepare_params)
    b2 : [1, Hp]  padded f32 bias          (from prepare_params)
    """
    B, S, H = x.shape
    M = B * S
    Hp = w2.shape[0]
    assert Hp >= H and w2.shape == (Hp, Hp) and b2.shape == (1, Hp)

    compute_dtype = w2.dtype
    out_dtype = out_dtype or x.dtype
    cb = jnp.dtype(compute_dtype).itemsize
    ob = jnp.dtype(out_dtype).itemsize
    # Packed-sublane multiple for the M (sublane) tile: 8 f32 / 16 bf16 / 32 8-bit.
    sub = 8 * max(1, 4 // cb)

    # M tiling: ~tm_target rows per tile, >=2 (even) grid steps when M allows
    # (feeds both v7x TensorCores and enables DMA/compute pipelining), tm
    # derived from cdiv(M, n_tiles) so the last tile isn't mostly padding.
    n_tiles = max(pl.cdiv(M, tm_target), 1)
    if n_tiles == 1 and M > sub:
        n_tiles = 2
    if n_tiles > 1 and n_tiles % 2 == 1:
        n_tiles += 1
    tm = _round_up(pl.cdiv(M, n_tiles), sub)
    n_tiles = pl.cdiv(M, tm)
    Mp = n_tiles * tm

    x2 = x.reshape(M, H)
    if x2.dtype != compute_dtype:
        x2 = x2.astype(compute_dtype)
    if (Mp != M) or (Hp != H):
        # Zero padding: padded K-columns of W^T are zero so padded x columns
        # contribute nothing; padded M rows are sliced off below.
        x2 = jnp.pad(x2, ((0, Mp - M), (0, Hp - H)))

    # Resident operands: constant index_map, single buffer when supported.
    w_spec, w_bufs = _const_block_spec((Hp, Hp))
    b_spec, _ = _const_block_spec((1, Hp))

    # VMEM budget from actual footprint, capped by physical VMEM minus headroom.
    vmem_needed = (2 * tm * Hp * cb          # x tiles (double-buffered)
                   + 2 * tm * Hp * ob        # out tiles (double-buffered)
                   + w_bufs * Hp * Hp * cb   # resident W^T
                   + 2 * Hp * 4)             # f32 bias
    cap = _vmem_cap_bytes() - (6 << 20)
    vmem_limit = int(min(max(vmem_needed + (4 << 20), 32 << 20), cap))

    out2 = pl.pallas_call(
        _residual_linear_kernel,
        out_shape=jax.ShapeDtypeStruct((Mp, Hp), out_dtype),
        grid_spec=pltpu.PrefetchScalarGridSpec(
            num_scalar_prefetch=0,
            grid=(n_tiles,),
            in_specs=[
                pl.BlockSpec((tm, Hp), lambda i: (i, 0)),   # x tile (streamed)
                w_spec,                                     # W^T (resident)
                b_spec,                                     # bias (resident)
            ],
            out_specs=pl.BlockSpec((tm, Hp), lambda i: (i, 0)),
        ),
        compiler_params=pltpu.CompilerParams(
            dimension_semantics=("parallel",),   # M tiles independent -> megacore
            vmem_limit_bytes=vmem_limit,
        ),
    )(x2, w2, b2)

    return out2[:M, :H].reshape(B, S, H)


if __name__ == "__main__":
    key = jax.random.PRNGKey(0)
    kx, kw, kb = jax.random.split(key, 3)

    B, S, H = 2, 8, 32
    x = jax.random.normal(kx, (B, S, H), dtype=jnp.float32)

    # Deterministic "Linear(H, H)" parameters (PyTorch-style uniform init).
    bound = 1.0 / (H ** 0.5)
    w = jax.random.uniform(kw, (H, H), minval=-bound, maxval=bound,
                           dtype=jnp.float32)   # PyTorch weight: [out, in]
    b = jax.random.uniform(kb, (H,), minval=-bound, maxval=bound,
                           dtype=jnp.float32)

    ref = x @ w.T + b + x   # plain-JAX reference (same math as Residual(Linear))

    # Production path: bf16 x / W^T / out, f32 MXU accumulation + f32 epilogue.
    w2_bf, b2 = prepare_params(w.T, b, compute_dtype=jnp.bfloat16)
    out_bf = residual_linear(x.astype(jnp.bfloat16), w2_bf, b2)
    jax.block_until_ready(out_bf)
    assert out_bf.shape == ref.shape, "shape mismatch vs reference (bf16 path)"
    assert out_bf.dtype == jnp.bfloat16
    assert jnp.allclose(out_bf.astype(jnp.float32), ref, atol=5e-2, rtol=5e-2), \
        "mismatch vs reference (bf16 path)"

    # Debug/reference path: full f32, strict tolerance.
    w2_f32, b2_f32 = prepare_params(w.T, b, compute_dtype=jnp.float32)
    out_f32 = residual_linear(x, w2_f32, b2_f32)
    jax.block_until_ready(out_f32)
    assert out_f32.shape == ref.shape, "shape mismatch vs reference (f32 path)"
    assert jnp.allclose(out_f32, ref, atol=1e-5, rtol=1e-5), \
        "mismatch vs reference (f32 path)"

    print("KERNEL_OK")
</pallas_src>

<mosaic_0001>
module attributes {stable_mosaic.version = 11 : i64} {
  func.func @_residual_linear_kernel(%arg0: i32, %arg1: memref<16x128xbf16, #tpu.memory_space<vmem>>, %arg2: memref<128x128xbf16, #tpu.memory_space<vmem>>, %arg3: memref<1x128xf32, #tpu.memory_space<vmem>>, %arg4: memref<16x128xbf16, #tpu.memory_space<vmem>>) attributes {dimension_semantics = [#tpu.dimension_semantics<parallel>], iteration_bounds = array<i64: 1>, scalar_prefetch = 0 : i64, scratch_operands = 0 : i64, tpu.core_type = #tpu.core_type<tc>, window_params = [{transform_indices = @transform_0, window_bounds = array<i64: 16, 128>}, {pipeline_mode = #tpu.pipeline_mode<synchronous>, transform_indices = @transform_1, window_bounds = array<i64: 128, 128>}, {pipeline_mode = #tpu.pipeline_mode<synchronous>, transform_indices = @transform_2, window_bounds = array<i64: 1, 128>}, {transform_indices = @transform_3, window_bounds = array<i64: 16, 128>}]} {
    %c0 = arith.constant 0 : index
    %c0_0 = arith.constant 0 : index
    %0 = vector.load %arg1[%c0, %c0_0] : memref<16x128xbf16, #tpu.memory_space<vmem>>, vector<16x128xbf16>
    %c0_1 = arith.constant 0 : index
    %c0_2 = arith.constant 0 : index
    %1 = vector.load %arg2[%c0_1, %c0_2] : memref<128x128xbf16, #tpu.memory_space<vmem>>, vector<128x128xbf16>
    %cst = arith.constant dense<0.000000e+00> : vector<16x128xf32>
    %2 = tpu.matmul %0, %1, %cst {dimension_numbers = #tpu.dot_dimension_numbers<[1], [0], [0], [1], [0, 0, 1, 1], [], []>} : vector<16x128xbf16>, vector<128x128xbf16>, vector<16x128xf32> -> vector<16x128xf32>
    %c0_3 = arith.constant 0 : index
    %c0_4 = arith.constant 0 : index
    %3 = vector.load %arg3[%c0_3, %c0_4] : memref<1x128xf32, #tpu.memory_space<vmem>>, vector<1x128xf32>
    %4 = vector.broadcast %3 : vector<1x128xf32> to vector<16x128xf32>
    %5 = arith.addf %2, %4 : vector<16x128xf32>
    %6 = arith.extf %0 : vector<16x128xbf16> to vector<16x128xf32>
    %7 = arith.addf %5, %6 : vector<16x128xf32>
    %8 = arith.truncf %7 : vector<16x128xf32> to vector<16x128xbf16>
    %c0_5 = arith.constant 0 : index
    %c0_6 = arith.constant 0 : index
    %9 = vector.load %arg4[%c0_5, %c0_6] : memref<16x128xbf16, #tpu.memory_space<vmem>>, vector<16x128xbf16>
    tpu.vector_store %arg4[%c0_5, %c0_6], %8 {strides = array<i32>} : memref<16x128xbf16, #tpu.memory_space<vmem>>, vector<16x128xbf16>,
    return
  }
  func.func @transform_0(%arg0: i32) -> (i32, i32) {
    %c0_i32 = arith.constant 0 : i32
    %c0_i32_0 = arith.constant 0 : i32
    return %arg0, %c0_i32 : i32, i32
  }
  func.func @transform_1(%arg0: i32) -> (i32, i32) {
    %c0_i32 = arith.constant 0 : i32
    %c0_i32_0 = arith.constant 0 : i32
    %c0_i32_1 = arith.constant 0 : i32
    return %c0_i32, %c0_i32_0 : i32, i32
  }
  func.func @transform_2(%arg0: i32) -> (i32, i32) {
    %c0_i32 = arith.constant 0 : i32
    %c0_i32_0 = arith.constant 0 : i32
    %c0_i32_1 = arith.constant 0 : i32
    return %c0_i32, %c0_i32_0 : i32, i32
  }
  func.func @transform_3(%arg0: i32) -> (i32, i32) {
    %c0_i32 = arith.constant 0 : i32
    %c0_i32_0 = arith.constant 0 : i32
    return %arg0, %c0_i32 : i32, i32
  }
}

</mosaic_0001>

<llo_original>
// kernel: tpu_custom_call.1
$region0: #{tpu_custom_call.1}
  #allocation0 [shape = 'u32[]', space=smem, size = 0x4, offset = 0x4, fixed_abs, tag = 'smem constant byte address 0x4 - core index']
  #allocation1 [shape = 'u32[144,128]{1,0:T(1,128)}', space=vmem, size = 0x12000, scoped, tag = 'internal scratch']
  %s0 = inlined_call_operand.hbm [shape: bf16[16,128], index: 0, kind: input, shape index: {}]
  %s1 = inlined_call_operand.hbm [shape: bf16[128,128], index: 1, kind: input, shape index: {}]
  %s2 = inlined_call_operand.vmem [shape: f32[1,128], index: 2, kind: input, shape index: {}]
  %s3 = inlined_call_operand.hbm [shape: bf16[16,128], index: 3, kind: output, shape index: {}]
  %s4 = sld [smem:[#allocation0]]
  $region30: #{tpu_custom_call.1} parent=0
    _
  %s6 = ssub.s32 1, %s4
  %s7 = scalar_select 0, %s6, %s4
  $region1: #{tpu_custom_call.1} parent=0
    #allocation2 [shape = 'u8[4096]{0}', space=vmem, size = 0x1000, scoped, tag = 'input window, operand 0, single buffered']
    #allocation3 [shape = 's32[1]{0}', space=sflag, size = 0x4, scoped, tag = 'scoped memory for tpu_custom_call.1']
    #allocation4 [shape = 's32[1]{0}', space=sflag, size = 0x4, scoped, tag = 'scoped memory for tpu_custom_call.1']
    #allocation5 [shape = 'u8[32768]{0}', space=vmem, size = 0x8000, scoped, tag = 'input window, operand 1, single buffered']
    #allocation6 [shape = 's32[1]{0}', space=sflag, size = 0x4, scoped, tag = 'scoped memory for tpu_custom_call.1']
    #allocation7 [shape = 'u8[4096]{0}', space=vmem, size = 0x1000, scoped, tag = 'output window, operand 0, single buffered']
    %8 = vsyncpa [#allocation3], 0
    %9 = vsyncpa [#allocation6], 0
    %10 = vsyncpa [#allocation4], 0
    // Predicated region
    $region2: #{tpu_custom_call.1} parent=1 // pred_check
      _
    $region3: #{tpu_custom_call.1} parent=1 // pred_check_branch
      %12 = sbr.rel (0) target = $region5
    $region4: #{tpu_custom_call.1} parent=1 // pred_region
      %s14 = ssub.s32 128, 128
      %15 = vsyncadd [#allocation3], %s14
      %s16 = sshll.u32 [#allocation2], 4
      %s17 = int_to_ptr.vmem [resolvable:$true] %s16
      %22 = dma.hbm_to_vmem [thread:$0]  %s0, 128, %s17, [#allocation3], 64, 64, 4
    $region5: #{tpu_custom_call.1} parent=1 // pred_fallthru
      _
    // Predicated region
    $region6: #{tpu_custom_call.1} parent=1 // pred_check
      _
    $region7: #{tpu_custom_call.1} parent=1 // pred_check_branch
      %24 = sbr.rel (0) target = $region9
    $region8: #{tpu_custom_call.1} parent=1 // pred_region
      %s26 = ssub.s32 1024, 1024
      %27 = vsyncadd [#allocation6], %s26
      %s28 = sshll.u32 [#allocation5], 4
      %s29 = int_to_ptr.vmem [resolvable:$true] %s28
      %34 = dma.hbm_to_vmem [thread:$0]  %s1, 1024, %s29, [#allocation6], 64, 64, 4
    $region9: #{tpu_custom_call.1} parent=1 // pred_fallthru
      _
    // Predicated region
    $region10: #{tpu_custom_call.1} parent=1 // pred_check
      _
    $region11: #{tpu_custom_call.1} parent=1 // pred_check_branch
      %36 = sbr.rel (0) target = $region13
    $region12: #{tpu_custom_call.1} parent=1 // pred_region
      _
    $region13: #{tpu_custom_call.1} parent=1 // pred_fallthru
      _
    // Predicated region
    $region14: #{tpu_custom_call.1} parent=1 // pred_check
      _
    $region15: #{tpu_custom_call.1} parent=1 // pred_check_branch
      %38 = sbr.rel (0) target = $region17
    $region16: #{tpu_custom_call.1} parent=1 // pred_region
      %39 = dma.done [#allocation3], 128
    $region17: #{tpu_custom_call.1} parent=1 // pred_fallthru
      _
    // Predicated region
    $region18: #{tpu_custom_call.1} parent=1 // pred_check
      _
    $region19: #{tpu_custom_call.1} parent=1 // pred_check_branch
      %41 = sbr.rel (0) target = $region21
    $region20: #{tpu_custom_call.1} parent=1 // pred_region
      %42 = dma.done [#allocation6], 1024
    $region21: #{tpu_custom_call.1} parent=1 // pred_fallthru
      _
    %v44 = vld [vmem:[#allocation2] sm:$0xf]
    %v45 = vld [vmem:[#allocation2 + $0x4] sm:$0xf]
    %v46 = vld [vmem:[#allocation5] sm:$0xf]
    %v47 = vld [vmem:[#allocation5 + $0x4] sm:$0xf]
    %v48 = vld [vmem:[#allocation5 + $0x8] sm:$0xf]
    %v49 = vld [vmem:[#allocation5 + $0xc] sm:$0xf]
    %v50 = vld [vmem:[#allocation5 + $0x10] sm:$0xf]
    %v51 = vld [vmem:[#allocation5 + $0x14] sm:$0xf]
    %v52 = vld [vmem:[#allocation5 + $0x18] sm:$0xf]
    %v53 = vld [vmem:[#allocation5 + $0x1c] sm:$0xf]
    %v54 = vld [vmem:[#allocation5 + $0x20] sm:$0xf]
    %v55 = vld [vmem:[#allocation5 + $0x24] sm:$0xf]
    %v56 = vld [vmem:[#allocation5 + $0x28] sm:$0xf]
    %v57 = vld [vmem:[#allocation5 + $0x2c] sm:$0xf]
    %v58 = vld [vmem:[#allocation5 + $0x30] sm:$0xf]
    %v59 = vld [vmem:[#allocation5 + $0x34] sm:$0xf]
    %v60 = vld [vmem:[#allocation5 + $0x38] sm:$0xf]
    %v61 = vld [vmem:[#allocation5 + $0x3c] sm:$0xf]
    %v62 = vld [vmem:[%s2] sm:$0x1]
    %v64 = vlaneseq
    %v65 = vshrl.u32 %v64, 7
    %v66 = vsub.s32 0, %v65
    %v67 = vrot.slane %v62, %v66
    %v71 = vunpack.c.l.b16 %v44
    %v72 = vunpack.c.l.b16 %v45
    %v73 = vpack.c.b16 %v72, %v71
    %v91 = vunpack.c.l.b16 %v46
    %v92 = vunpack.c.l.b16 %v47
    %v93 = vunpack.c.l.b16 %v48
    %v94 = vunpack.c.l.b16 %v49
    %v95 = vunpack.c.l.b16 %v50
    %v96 = vunpack.c.l.b16 %v51
    %v97 = vunpack.c.l.b16 %v52
    %v98 = vunpack.c.l.b16 %v53
    %v99 = vunpack.c.l.b16 %v54
    %v100 = vunpack.c.l.b16 %v55
    %v101 = vunpack.c.l.b16 %v56
    %v102 = vunpack.c.l.b16 %v57
    %v103 = vunpack.c.l.b16 %v58
    %v104 = vunpack.c.l.b16 %v59
    %v105 = vunpack.c.l.b16 %v60
    %v106 = vunpack.c.l.b16 %v61
    %v107 = vpack.c.b16 %v92, %v91
    %v108 = vpack.c.b16 %v94, %v93
    %v109 = vpack.c.b16 %v96, %v95
    %v110 = vpack.c.b16 %v98, %v97
    %v111 = vpack.c.b16 %v100, %v99
    %v112 = vpack.c.b16 %v102, %v101
    %v113 = vpack.c.b16 %v104, %v103
    %v114 = vpack.c.b16 %v106, %v105
    %123 = vmatprep.subr.bf16.mxu0 0
    %124 = vmatpush1.bf16.msra.mxu0 %v107
    %125 = vmatprep.subr.bf16.mxu0 0
    %126 = vmatpush1.bf16.msra.mxu0 %v108
    %127 = vmatprep.subr.bf16.mxu0 0
    %128 = vmatpush1.bf16.msra.mxu0 %v109
    %129 = vmatprep.subr.bf16.mxu0 0
    %130 = vmatpush1.bf16.msra.mxu0 %v110
    %131 = vmatprep.subr.bf16.mxu0 0
    %132 = vmatpush1.bf16.msra.mxu0 %v111
    %133 = vmatprep.subr.bf16.mxu0 0
    %134 = vmatpush1.bf16.msra.mxu0 %v112
    %135 = vmatprep.subr.bf16.mxu0 0
    %136 = vmatpush1.bf16.msra.mxu0 %v113
    %137 = vmatprep.subr.bf16.mxu0 0
    %138 = vmatpush1.bf16.msra.mxu0 %v114
    %139 = vmatprep.subr.bf16.mxu0 0
    %140 = vmatpush1.bf16.msra.mxu0 0
    %141 = vmatprep.subr.bf16.mxu0 0
    %142 = vmatpush1.bf16.msra.mxu0 0
    %143 = vmatprep.subr.bf16.mxu0 0
    %144 = vmatpush1.bf16.msra.mxu0 0
    %145 = vmatprep.subr.bf16.mxu0 0
    %146 = vmatpush1.bf16.msra.mxu0 0
    %147 = vmatprep.subr.bf16.mxu0 0
    %148 = vmatpush1.bf16.msra.mxu0 0
    %149 = vmatprep.subr.bf16.mxu0 0
    %150 = vmatpush1.bf16.msra.mxu0 0
    %151 = vmatprep.subr.bf16.mxu0 0
    %152 = vmatpush1.bf16.msra.mxu0 0
    %153 = vmatprep.subr.bf16.mxu0 0
    %154 = vmatpush1.bf16.msra.mxu0 0
    %155 = vmatprep.mubr.bf16.mxu0 0
    %156 = vmatmul.mubr.bf16.gmra.mrb[0].mxu0 %v73
    %v157 = vpop.f32.mrb[0].mxu0
    %v158 = vadd.f32 %v67, %v157
    %v159 = vpop.f32.mrb[0].mxu0
    %v160 = vpop.f32.mrb[0].mxu0
    %v161 = vadd.f32 %v67, %v160
    %v162 = vpop.f32.mrb[0].mxu0
    %163 = vdwg.mxu0
    %v164 = vunpack.c.l.bf16 %v44
    %v165 = vunpack.c.l.bf16 %v45
    %v166 = vadd.f32 %v158, %v164
    %v167 = vadd.f32 %v161, %v165
    %v168 = vpack.c.bf16 %v167, %v166
    %v170 = vunpack.c.l.b16 %v168
    %v171 = vunpack.c.h.b16 %v168
    %v172 = vpack.c.b16 %v170, %v170
    %v173 = vpack.c.b16 %v171, %v171
    %176 = vst [vmem:[#allocation7] sm:$0xf] %v172
    %177 = vst [vmem:[#allocation7 + $0x4] sm:$0xf] %v173
    // Predicated region
    $region22: #{tpu_custom_call.1} parent=1 // pred_check
      _
    $region23: #{tpu_custom_call.1} parent=1 // pred_check_branch
      %179 = sbr.rel (0) target = $region25
    $region24: #{tpu_custom_call.1} parent=1 // pred_region
      %s181 = ssub.s32 128, 128
      %182 = vsyncadd [#allocation4], %s181
      %s183 = sshll.u32 [#allocation7], 4
      %s184 = int_to_ptr.vmem [resolvable:$true] %s183
      %189 = dma.vmem_to_hbm [thread:$0]  %s184, 128, %s3, [#allocation4], 64, 64, 4
    $region25: #{tpu_custom_call.1} parent=1 // pred_fallthru
      _
    // Predicated region
    $region26: #{tpu_custom_call.1} parent=1 // pred_check
      _
    $region27: #{tpu_custom_call.1} parent=1 // pred_check_branch
      %191 = sbr.rel (0) target = $region29
    $region28: #{tpu_custom_call.1} parent=1 // pred_region
      %192 = dma.done [#allocation4], 128
    $region29: #{tpu_custom_call.1} parent=1 // pred_fallthru
      _
    %193 = vsyncpa [#allocation3], 1
    %194 = vsyncpa [#allocation6], 1
    %195 = vsyncpa [#allocation4], 1

</llo_original>
